<compile_context>
chip_gen: v7x
topology: tpu7x:2x2x1
jax: 0.10.0
libtpu: 0.0.40
codegen_flags: <defaults>
</compile_context>

<pallas_src>
import functools

import jax
import jax.numpy as jnp
import numpy as np
from jax import lax
from jax.experimental import pallas as pl
from jax.experimental.pallas import tpu as pltpu

_EPS = 1e-12  # F.normalize default eps


def _aggregator_kernel(self_ref, nv_ref, nr_ref, user_ref, wt_ref, b_ref,
                       out_ref, *, aggregator, n_neighbors, n_entities,
                       tile_rows):
    dim = self_ref.shape[1]

    sv = self_ref[...].astype(jnp.float32)            # (tm, D)
    u_all = user_ref[...]                              # (B, D), f32, normalized

    # Per-row user embedding built in VMEM (no HBM-materialized repeat):
    # global row r belongs to batch b iff b*E <= r < (b+1)*E, so a 0/1
    # one-hot (tm, B) @ (B, D) selects the right user row (MXU has slack).
    n_batch = user_ref.shape[0]
    row0 = pl.program_id(0) * tile_rows
    gr = row0 + lax.broadcasted_iota(jnp.int32, (tile_rows, n_batch), 0)
    be = lax.broadcasted_iota(jnp.int32, (tile_rows, n_batch), 1) * n_entities
    onehot = ((gr >= be) & (gr < be + n_entities)).astype(jnp.float32)
    u_n = jnp.dot(onehot, u_all, preferred_element_type=jnp.float32)   # (tm, D)

    eps2 = _EPS * _EPS
    agg = jnp.zeros_like(sv)
    # Static unroll is fine for small N; switch to lax.fori_loop(unroll=True)
    # if n_neighbors grows beyond ~8 to bound vreg live ranges.
    for n in range(n_neighbors):
        nvn = nv_ref[:, n * dim:(n + 1) * dim].astype(jnp.float32)  # (tm, D)
        nrn = nr_ref[:, n * dim:(n + 1) * dim].astype(jnp.float32)  # (tm, D)
        # Folded normalization:
        #   dot(u_n, x / max(||x||, eps)) == dot(u_n, x) * rsqrt(max(||x||^2, eps^2))
        inv_v = lax.rsqrt(jnp.maximum(jnp.sum(nvn * nvn, -1, keepdims=True), eps2))
        inv_r = lax.rsqrt(jnp.maximum(jnp.sum(nrn * nrn, -1, keepdims=True), eps2))
        sim = jax.nn.sigmoid(jnp.sum(u_n * nvn, -1, keepdims=True) * inv_v)
        rel = jax.nn.sigmoid(jnp.sum(u_n * nrn, -1, keepdims=True) * inv_r)
        # swap-attention wiring: relation score gates vectors, and vice versa.
        agg = agg + rel * nvn + sim * nrn

    wt = wt_ref[...]
    if aggregator == 'concat':
        # cat((sv, agg), -1) @ Wt  ==  sv @ Wt[:D] + agg @ Wt[D:]
        out = (jnp.dot(sv, wt[0:dim, :], preferred_element_type=jnp.float32)
               + jnp.dot(agg, wt[dim:2 * dim, :],
                         preferred_element_type=jnp.float32))
    elif aggregator == 'sum':
        out = jnp.dot(sv + agg, wt, preferred_element_type=jnp.float32)
    else:  # torch module's `else` branch -> elementwise max
        out = jnp.dot(jnp.maximum(sv, agg), wt, preferred_element_type=jnp.float32)

    out_ref[...] = (out + b_ref[...]).astype(out_ref.dtype)


def _choose_row_tile(rows, n_neighbors, dim, in_itemsize, out_itemsize):
    """Row tile + explicit VMEM limit.

    Budget-driven (double-buffered working set ~24 MiB), capped at 512 rows,
    clamped to give >= 2 grid steps (v7x megacore), and nudged onto a divisor
    of `rows` when possible so no pad copy is needed.
    """
    lanes_nbr = -(-(n_neighbors * dim) // 128) * 128   # lane-padded (tm, N*D)
    lanes_d = -(-dim // 128) * 128                     # lane-padded (tm, D)
    per_row = (2 * lanes_nbr * in_itemsize             # nv + nr
               + lanes_d * in_itemsize                 # self
               + lanes_d * out_itemsize)               # output
    budget = 24 << 20                                  # double-buffered inputs/out
    tm = budget // (2 * max(per_row, 1))
    tm = int(max(8, min(512, (tm // 8) * 8)))

    rows_p8 = -(-rows // 8) * 8
    tm = min(tm, rows_p8)
    # v7x: keep at least 2 grid steps so both TensorCores get work.
    if rows_p8 >= 16:
        tm = min(tm, max(8, ((rows_p8 // 2) // 8) * 8))
    # Prefer a tile that divides `rows` exactly (drops the pad copy).
    if rows % 8 == 0:
        for cand in range(tm, max(8, tm // 2) - 1, -8):
            if rows % cand == 0:
                tm = cand
                break

    vmem_needed = 2 * tm * per_row + (4 << 20)         # + resident/scratch slack
    # Explicit scoped-VMEM limit: above v5e's 16 MiB default, under v7x's
    # 64 MiB physical per-TC VMEM.
    vmem_limit = int(min(56 << 20, max(32 << 20, vmem_needed)))
    return tm, vmem_limit


def aggregator_forward(self_vectors, neighbor_vectors, neighbor_relations,
                       user_embeddings, weight_t, bias, aggregator='sum'):
    """weight_t is the transposed Linear weight: (in_dim, D); bias is (D,)."""
    B, E, N, D = neighbor_vectors.shape
    in_dim = 2 * D if aggregator == 'concat' else D
    assert weight_t.shape == (in_dim, D)
    rows = B * E

    # ---- wrapper side: free reshapes only, native dtype for big tensors ----
    sv = self_vectors.reshape(rows, D)
    nv = neighbor_vectors.reshape(rows, N * D)
    nr = neighbor_relations.reshape(rows, N * D)

    # User embedding is tiny: normalize once in f32 in the wrapper.
    u = user_embeddings.astype(jnp.float32)
    u_n = u * lax.rsqrt(
        jnp.maximum(jnp.sum(u * u, axis=-1, keepdims=True), _EPS * _EPS))

    out_dtype = self_vectors.dtype
    tm, vmem_limit = _choose_row_tile(
        rows, N, D,
        in_itemsize=jnp.dtype(neighbor_vectors.dtype).itemsize,
        out_itemsize=jnp.dtype(out_dtype).itemsize)

    grid = pl.cdiv(rows, tm)
    rows_p = grid * tm
    pad = rows_p - rows
    if pad:  # only when no divisor tile exists; small boundary copy
        sv = jnp.pad(sv, ((0, pad), (0, 0)))
        nv = jnp.pad(nv, ((0, pad), (0, 0)))
        nr = jnp.pad(nr, ((0, pad), (0, 0)))

    wt = weight_t.astype(jnp.float32)                  # small, resident
    b2 = bias.reshape(1, D).astype(jnp.float32)        # small, resident

    kernel = functools.partial(_aggregator_kernel, aggregator=aggregator,
                               n_neighbors=N, n_entities=E, tile_rows=tm)

    out = pl.pallas_call(
        kernel,
        out_shape=jax.ShapeDtypeStruct((rows_p, D), out_dtype),
        grid=(grid,),
        in_specs=[
            pl.BlockSpec((tm, D), lambda i: (i, 0)),        # self rows
            pl.BlockSpec((tm, N * D), lambda i: (i, 0)),    # neighbor vectors
            pl.BlockSpec((tm, N * D), lambda i: (i, 0)),    # neighbor relations
            pl.BlockSpec((B, D), lambda i: (0, 0)),         # user table (resident)
            pl.BlockSpec((in_dim, D), lambda i: (0, 0)),    # weight (resident)
            pl.BlockSpec((1, D), lambda i: (0, 0)),         # bias (resident)
        ],
        out_specs=pl.BlockSpec((tm, D), lambda i: (i, 0)),
        compiler_params=pltpu.CompilerParams(
            dimension_semantics=("parallel",),              # v7x: 2 TCs
            vmem_limit_bytes=vmem_limit),
    )(sv, nv, nr, u_n, wt, b2)

    return out[:rows]


def aggregator_reference(self_vectors, neighbor_vectors, neighbor_relations,
                         user_embeddings, weight_t, bias, aggregator='sum'):
    """Pure-JAX replica of the PyTorch forward (for correctness checking)."""
    B, E, N, D = neighbor_vectors.shape
    u = user_embeddings.reshape(B, 1, 1, D)

    def norm(x):
        n = jnp.sqrt(jnp.sum(x * x, axis=-1, keepdims=True))
        return x / jnp.maximum(n, _EPS)

    u_n, nv_n, nr_n = norm(u), norm(neighbor_vectors), norm(neighbor_relations)
    rel = jax.nn.sigmoid(jnp.sum(u_n * nr_n, -1))[..., None]
    sim = jax.nn.sigmoid(jnp.sum(u_n * nv_n, -1))[..., None]
    agg = jnp.sum(rel * neighbor_vectors + sim * neighbor_relations, axis=2)

    if aggregator == 'sum':
        out = (self_vectors + agg).reshape(-1, D)
    elif aggregator == 'concat':
        out = jnp.concatenate([self_vectors, agg], axis=-1).reshape(-1, 2 * D)
    else:
        out = jnp.maximum(self_vectors, agg).reshape(-1, D)
    return out @ weight_t + bias


if __name__ == "__main__":
    key = jax.random.PRNGKey(0)
    B, E, N, D = 2, 8, 4, 32   # batch, entities, neighbors, dim

    k1, k2, k3, k4, k5, k6 = jax.random.split(key, 6)
    self_vectors = jax.random.normal(k1, (B, E, D), jnp.float32)
    neighbor_vectors = jax.random.normal(k2, (B, E, N, D), jnp.float32)
    neighbor_relations = jax.random.normal(k3, (B, E, N, D), jnp.float32)
    user_embeddings = jax.random.normal(k4, (B, D), jnp.float32)

    for aggregator in ('sum', 'max', 'concat'):
        in_dim = 2 * D if aggregator == 'concat' else D
        bound = 1.0 / np.sqrt(in_dim)
        # deterministic synthetic Linear params (same shapes as torch.nn.Linear)
        weight_t = jax.random.uniform(k5, (in_dim, D), jnp.float32, -bound, bound)
        bias = jax.random.uniform(k6, (D,), jnp.float32, -bound, bound)

        out = aggregator_forward(self_vectors, neighbor_vectors,
                                 neighbor_relations, user_embeddings,
                                 weight_t, bias, aggregator=aggregator)
        out = jax.block_until_ready(out)

        ref = aggregator_reference(self_vectors, neighbor_vectors,
                                   neighbor_relations, user_embeddings,
                                   weight_t, bias, aggregator=aggregator)
        np.testing.assert_allclose(np.asarray(out), np.asarray(ref),
                                   rtol=1e-3, atol=1e-3)

    print("KERNEL_OK")
</pallas_src>

<mosaic_0001>
module attributes {stable_mosaic.version = 11 : i64} {
  func.func @_aggregator_kernel(%arg0: i32, %arg1: memref<8x32xf32, #tpu.memory_space<vmem>>, %arg2: memref<8x128xf32, #tpu.memory_space<vmem>>, %arg3: memref<8x128xf32, #tpu.memory_space<vmem>>, %arg4: memref<2x32xf32, #tpu.memory_space<vmem>>, %arg5: memref<32x32xf32, #tpu.memory_space<vmem>>, %arg6: memref<1x32xf32, #tpu.memory_space<vmem>>, %arg7: memref<8x32xf32, #tpu.memory_space<vmem>>) attributes {dimension_semantics = [#tpu.dimension_semantics<parallel>], iteration_bounds = array<i64: 2>, scalar_prefetch = 0 : i64, scratch_operands = 0 : i64, tpu.core_type = #tpu.core_type<tc>, window_params = [{transform_indices = @transform_0, window_bounds = array<i64: 8, 32>}, {transform_indices = @transform_1, window_bounds = array<i64: 8, 128>}, {transform_indices = @transform_2, window_bounds = array<i64: 8, 128>}, {pipeline_mode = #tpu.pipeline_mode<synchronous>, transform_indices = @transform_3, window_bounds = array<i64: 2, 32>}, {pipeline_mode = #tpu.pipeline_mode<synchronous>, transform_indices = @transform_4, window_bounds = array<i64: 32, 32>}, {pipeline_mode = #tpu.pipeline_mode<synchronous>, transform_indices = @transform_5, window_bounds = array<i64: 1, 32>}, {transform_indices = @transform_6, window_bounds = array<i64: 8, 32>}]} {
    %c0 = arith.constant 0 : index
    %c0_0 = arith.constant 0 : index
    %0 = vector.load %arg1[%c0, %c0_0] : memref<8x32xf32, #tpu.memory_space<vmem>>, vector<8x32xf32>
    %c0_1 = arith.constant 0 : index
    %c0_2 = arith.constant 0 : index
    %1 = vector.load %arg4[%c0_1, %c0_2] : memref<2x32xf32, #tpu.memory_space<vmem>>, vector<2x32xf32>
    %c8_i32 = arith.constant 8 : i32
    %2 = arith.muli %arg0, %c8_i32 : i32
    %3 = tpu.iota {dimensions = array<i32: 0>} : vector<8x2xi32>
    %4 = vector.broadcast %2 : i32 to vector<8x2xi32>
    %5 = arith.addi %4, %3 : vector<8x2xi32>
    %6 = tpu.iota {dimensions = array<i32: 1>} : vector<8x2xi32>
    %c8_i32_3 = arith.constant 8 : i32
    %7 = vector.broadcast %c8_i32_3 : i32 to vector<8x2xi32>
    %8 = arith.muli %6, %7 : vector<8x2xi32>
    %9 = arith.cmpi sge, %5, %8 : vector<8x2xi32>
    %c8_i32_4 = arith.constant 8 : i32
    %10 = vector.broadcast %c8_i32_4 : i32 to vector<8x2xi32>
    %11 = arith.addi %8, %10 : vector<8x2xi32>
    %12 = arith.cmpi slt, %5, %11 : vector<8x2xi32>
    %13 = arith.andi %9, %12 : vector<8x2xi1>
    %14 = arith.extui %13 : vector<8x2xi1> to vector<8x2xi32>
    %15 = arith.sitofp %14 : vector<8x2xi32> to vector<8x2xf32>
    %cst = arith.constant dense<0.000000e+00> : vector<8x32xf32>
    %16 = tpu.matmul %15, %1, %cst {dimension_numbers = #tpu.dot_dimension_numbers<[1], [0], [0], [1], [0, 0, 1, 1], [], []>} : vector<8x2xf32>, vector<2x32xf32>, vector<8x32xf32> -> vector<8x32xf32>
    %cst_5 = arith.constant 0.000000e+00 : f32
    %17 = vector.broadcast %cst_5 : f32 to vector<8x32xf32>
    %c0_6 = arith.constant 0 : index
    %c0_7 = arith.constant 0 : index
    %18 = vector.load %arg2[%c0_6, %c0_7] : memref<8x128xf32, #tpu.memory_space<vmem>>, vector<8x32xf32>
    %c0_8 = arith.constant 0 : index
    %c0_9 = arith.constant 0 : index
    %19 = vector.load %arg3[%c0_8, %c0_9] : memref<8x128xf32, #tpu.memory_space<vmem>>, vector<8x32xf32>
    %20 = arith.mulf %18, %18 : vector<8x32xf32>
    %cst_10 = arith.constant dense<0.000000e+00> : vector<8xf32>
    %21 = vector.multi_reduction <add>, %20, %cst_10 [1] : vector<8x32xf32> to vector<8xf32>
    %22 = vector.shape_cast %21 : vector<8xf32> to vector<8x1xf32>
    %cst_11 = arith.constant 1.000000e-24 : f32
    %23 = vector.broadcast %cst_11 : f32 to vector<8x1xf32>
    %24 = arith.maximumf %22, %23 : vector<8x1xf32>
    %25 = math.rsqrt %24 : vector<8x1xf32>
    %26 = arith.mulf %19, %19 : vector<8x32xf32>
    %cst_12 = arith.constant dense<0.000000e+00> : vector<8xf32>
    %27 = vector.multi_reduction <add>, %26, %cst_12 [1] : vector<8x32xf32> to vector<8xf32>
    %28 = vector.shape_cast %27 : vector<8xf32> to vector<8x1xf32>
    %cst_13 = arith.constant 1.000000e-24 : f32
    %29 = vector.broadcast %cst_13 : f32 to vector<8x1xf32>
    %30 = arith.maximumf %28, %29 : vector<8x1xf32>
    %31 = math.rsqrt %30 : vector<8x1xf32>
    %32 = arith.mulf %16, %18 : vector<8x32xf32>
    %cst_14 = arith.constant dense<0.000000e+00> : vector<8xf32>
    %33 = vector.multi_reduction <add>, %32, %cst_14 [1] : vector<8x32xf32> to vector<8xf32>
    %34 = vector.shape_cast %33 : vector<8xf32> to vector<8x1xf32>
    %35 = arith.mulf %34, %25 : vector<8x1xf32>
    %36 = arith.negf %35 : vector<8x1xf32>
    %37 = math.exp %36 : vector<8x1xf32>
    %cst_15 = arith.constant 1.000000e+00 : f32
    %38 = vector.broadcast %cst_15 : f32 to vector<8x1xf32>
    %39 = arith.addf %38, %37 : vector<8x1xf32>
    %40 = arith.divf %38, %39 : vector<8x1xf32>
    %41 = arith.mulf %16, %19 : vector<8x32xf32>
    %cst_16 = arith.constant dense<0.000000e+00> : vector<8xf32>
    %42 = vector.multi_reduction <add>, %41, %cst_16 [1] : vector<8x32xf32> to vector<8xf32>
    %43 = vector.shape_cast %42 : vector<8xf32> to vector<8x1xf32>
    %44 = arith.mulf %43, %31 : vector<8x1xf32>
    %45 = arith.negf %44 : vector<8x1xf32>
    %46 = math.exp %45 : vector<8x1xf32>
    %cst_17 = arith.constant 1.000000e+00 : f32
    %47 = vector.broadcast %cst_17 : f32 to vector<8x1xf32>
    %48 = arith.addf %47, %46 : vector<8x1xf32>
    %49 = arith.divf %47, %48 : vector<8x1xf32>
    %50 = vector.broadcast %49 : vector<8x1xf32> to vector<8x32xf32>
    %51 = arith.mulf %50, %18 : vector<8x32xf32>
    %52 = arith.addf %17, %51 : vector<8x32xf32>
    %53 = vector.broadcast %40 : vector<8x1xf32> to vector<8x32xf32>
    %54 = arith.mulf %53, %19 : vector<8x32xf32>
    %55 = arith.addf %52, %54 : vector<8x32xf32>
    %c0_18 = arith.constant 0 : index
    %c32 = arith.constant 32 : index
    %56 = vector.load %arg2[%c0_18, %c32] : memref<8x128xf32, #tpu.memory_space<vmem>>, vector<8x32xf32>
    %c0_19 = arith.constant 0 : index
    %c32_20 = arith.constant 32 : index
    %57 = vector.load %arg3[%c0_19, %c32_20] : memref<8x128xf32, #tpu.memory_space<vmem>>, vector<8x32xf32>
    %58 = arith.mulf %56, %56 : vector<8x32xf32>
    %cst_21 = arith.constant dense<0.000000e+00> : vector<8xf32>
    %59 = vector.multi_reduction <add>, %58, %cst_21 [1] : vector<8x32xf32> to vector<8xf32>
    %60 = vector.shape_cast %59 : vector<8xf32> to vector<8x1xf32>
    %cst_22 = arith.constant 1.000000e-24 : f32
    %61 = vector.broadcast %cst_22 : f32 to vector<8x1xf32>
    %62 = arith.maximumf %60, %61 : vector<8x1xf32>
    %63 = math.rsqrt %62 : vector<8x1xf32>
    %64 = arith.mulf %57, %57 : vector<8x32xf32>
    %cst_23 = arith.constant dense<0.000000e+00> : vector<8xf32>
    %65 = vector.multi_reduction <add>, %64, %cst_23 [1] : vector<8x32xf32> to vector<8xf32>
    %66 = vector.shape_cast %65 : vector<8xf32> to vector<8x1xf32>
    %cst_24 = arith.constant 1.000000e-24 : f32
    %67 = vector.broadcast %cst_24 : f32 to vector<8x1xf32>
    %68 = arith.maximumf %66, %67 : vector<8x1xf32>
    %69 = math.rsqrt %68 : vector<8x1xf32>
    %70 = arith.mulf %16, %56 : vector<8x32xf32>
    %cst_25 = arith.constant dense<0.000000e+00> : vector<8xf32>
    %71 = vector.multi_reduction <add>, %70, %cst_25 [1] : vector<8x32xf32> to vector<8xf32>
    %72 = vector.shape_cast %71 : vector<8xf32> to vector<8x1xf32>
    %73 = arith.mulf %72, %63 : vector<8x1xf32>
    %74 = arith.negf %73 : vector<8x1xf32>
    %75 = math.exp %74 : vector<8x1xf32>
    %cst_26 = arith.constant 1.000000e+00 : f32
    %76 = vector.broadcast %cst_26 : f32 to vector<8x1xf32>
    %77 = arith.addf %76, %75 : vector<8x1xf32>
    %78 = arith.divf %76, %77 : vector<8x1xf32>
    %79 = arith.mulf %16, %57 : vector<8x32xf32>
    %cst_27 = arith.constant dense<0.000000e+00> : vector<8xf32>
    %80 = vector.multi_reduction <add>, %79, %cst_27 [1] : vector<8x32xf32> to vector<8xf32>
    %81 = vector.shape_cast %80 : vector<8xf32> to vector<8x1xf32>
    %82 = arith.mulf %81, %69 : vector<8x1xf32>
    %83 = arith.negf %82 : vector<8x1xf32>
    %84 = math.exp %83 : vector<8x1xf32>
    %cst_28 = arith.constant 1.000000e+00 : f32
    %85 = vector.broadcast %cst_28 : f32 to vector<8x1xf32>
    %86 = arith.addf %85, %84 : vector<8x1xf32>
    %87 = arith.divf %85, %86 : vector<8x1xf32>
    %88 = vector.broadcast %87 : vector<8x1xf32> to vector<8x32xf32>
    %89 = arith.mulf %88, %56 : vector<8x32xf32>
    %90 = arith.addf %55, %89 : vector<8x32xf32>
    %91 = vector.broadcast %78 : vector<8x1xf32> to vector<8x32xf32>
    %92 = arith.mulf %91, %57 : vector<8x32xf32>
    %93 = arith.addf %90, %92 : vector<8x32xf32>
    %c0_29 = arith.constant 0 : index
    %c64 = arith.constant 64 : index
    %94 = vector.load %arg2[%c0_29, %c64] : memref<8x128xf32, #tpu.memory_space<vmem>>, vector<8x32xf32>
    %c0_30 = arith.constant 0 : index
    %c64_31 = arith.constant 64 : index
    %95 = vector.load %arg3[%c0_30, %c64_31] : memref<8x128xf32, #tpu.memory_space<vmem>>, vector<8x32xf32>
    %96 = arith.mulf %94, %94 : vector<8x32xf32>
    %cst_32 = arith.constant dense<0.000000e+00> : vector<8xf32>
    %97 = vector.multi_reduction <add>, %96, %cst_32 [1] : vector<8x32xf32> to vector<8xf32>
    %98 = vector.shape_cast %97 : vector<8xf32> to vector<8x1xf32>
    %cst_33 = arith.constant 1.000000e-24 : f32
    %99 = vector.broadcast %cst_33 : f32 to vector<8x1xf32>
    %100 = arith.maximumf %98, %99 : vector<8x1xf32>
    %101 = math.rsqrt %100 : vector<8x1xf32>
    %102 = arith.mulf %95, %95 : vector<8x32xf32>
    %cst_34 = arith.constant dense<0.000000e+00> : vector<8xf32>
    %103 = vector.multi_reduction <add>, %102, %cst_34 [1] : vector<8x32xf32> to vector<8xf32>
    %104 = vector.shape_cast %103 : vector<8xf32> to vector<8x1xf32>
    %cst_35 = arith.constant 1.000000e-24 : f32
    %105 = vector.broadcast %cst_35 : f32 to vector<8x1xf32>
    %106 = arith.maximumf %104, %105 : vector<8x1xf32>
    %107 = math.rsqrt %106 : vector<8x1xf32>
    %108 = arith.mulf %16, %94 : vector<8x32xf32>
    %cst_36 = arith.constant dense<0.000000e+00> : vector<8xf32>
    %109 = vector.multi_reduction <add>, %108, %cst_36 [1] : vector<8x32xf32> to vector<8xf32>
    %110 = vector.shape_cast %109 : vector<8xf32> to vector<8x1xf32>
    %111 = arith.mulf %110, %101 : vector<8x1xf32>
    %112 = arith.negf %111 : vector<8x1xf32>
    %113 = math.exp %112 : vector<8x1xf32>
    %cst_37 = arith.constant 1.000000e+00 : f32
    %114 = vector.broadcast %cst_37 : f32 to vector<8x1xf32>
    %115 = arith.addf %114, %113 : vector<8x1xf32>
    %116 = arith.divf %114, %115 : vector<8x1xf32>
    %117 = arith.mulf %16, %95 : vector<8x32xf32>
    %cst_38 = arith.constant dense<0.000000e+00> : vector<8xf32>
    %118 = vector.multi_reduction <add>, %117, %cst_38 [1] : vector<8x32xf32> to vector<8xf32>
    %119 = vector.shape_cast %118 : vector<8xf32> to vector<8x1xf32>
    %120 = arith.mulf %119, %107 : vector<8x1xf32>
    %121 = arith.negf %120 : vector<8x1xf32>
    %122 = math.exp %121 : vector<8x1xf32>
    %cst_39 = arith.constant 1.000000e+00 : f32
    %123 = vector.broadcast %cst_39 : f32 to vector<8x1xf32>
    %124 = arith.addf %123, %122 : vector<8x1xf32>
    %125 = arith.divf %123, %124 : vector<8x1xf32>
    %126 = vector.broadcast %125 : vector<8x1xf32> to vector<8x32xf32>
    %127 = arith.mulf %126, %94 : vector<8x32xf32>
    %128 = arith.addf %93, %127 : vector<8x32xf32>
    %129 = vector.broadcast %116 : vector<8x1xf32> to vector<8x32xf32>
    %130 = arith.mulf %129, %95 : vector<8x32xf32>
    %131 = arith.addf %128, %130 : vector<8x32xf32>
    %c0_40 = arith.constant 0 : index
    %c96 = arith.constant 96 : index
    %132 = vector.load %arg2[%c0_40, %c96] : memref<8x128xf32, #tpu.memory_space<vmem>>, vector<8x32xf32>
    %c0_41 = arith.constant 0 : index
    %c96_42 = arith.constant 96 : index
    %133 = vector.load %arg3[%c0_41, %c96_42] : memref<8x128xf32, #tpu.memory_space<vmem>>, vector<8x32xf32>
    %134 = arith.mulf %132, %132 : vector<8x32xf32>
    %cst_43 = arith.constant dense<0.000000e+00> : vector<8xf32>
    %135 = vector.multi_reduction <add>, %134, %cst_43 [1] : vector<8x32xf32> to vector<8xf32>
    %136 = vector.shape_cast %135 : vector<8xf32> to vector<8x1xf32>
    %cst_44 = arith.constant 1.000000e-24 : f32
    %137 = vector.broadcast %cst_44 : f32 to vector<8x1xf32>
    %138 = arith.maximumf %136, %137 : vector<8x1xf32>
    %139 = math.rsqrt %138 : vector<8x1xf32>
    %140 = arith.mulf %133, %133 : vector<8x32xf32>
    %cst_45 = arith.constant dense<0.000000e+00> : vector<8xf32>
    %141 = vector.multi_reduction <add>, %140, %cst_45 [1] : vector<8x32xf32> to vector<8xf32>
    %142 = vector.shape_cast %141 : vector<8xf32> to vector<8x1xf32>
    %cst_46 = arith.constant 1.000000e-24 : f32
    %143 = vector.broadcast %cst_46 : f32 to vector<8x1xf32>
    %144 = arith.maximumf %142, %143 : vector<8x1xf32>
    %145 = math.rsqrt %144 : vector<8x1xf32>
    %146 = arith.mulf %16, %132 : vector<8x32xf32>
    %cst_47 = arith.constant dense<0.000000e+00> : vector<8xf32>
    %147 = vector.multi_reduction <add>, %146, %cst_47 [1] : vector<8x32xf32> to vector<8xf32>
    %148 = vector.shape_cast %147 : vector<8xf32> to vector<8x1xf32>
    %149 = arith.mulf %148, %139 : vector<8x1xf32>
    %150 = arith.negf %149 : vector<8x1xf32>
    %151 = math.exp %150 : vector<8x1xf32>
    %cst_48 = arith.constant 1.000000e+00 : f32
    %152 = vector.broadcast %cst_48 : f32 to vector<8x1xf32>
    %153 = arith.addf %152, %151 : vector<8x1xf32>
    %154 = arith.divf %152, %153 : vector<8x1xf32>
    %155 = arith.mulf %16, %133 : vector<8x32xf32>
    %cst_49 = arith.constant dense<0.000000e+00> : vector<8xf32>
    %156 = vector.multi_reduction <add>, %155, %cst_49 [1] : vector<8x32xf32> to vector<8xf32>
    %157 = vector.shape_cast %156 : vector<8xf32> to vector<8x1xf32>
    %158 = arith.mulf %157, %145 : vector<8x1xf32>
    %159 = arith.negf %158 : vector<8x1xf32>
    %160 = math.exp %159 : vector<8x1xf32>
    %cst_50 = arith.constant 1.000000e+00 : f32
    %161 = vector.broadcast %cst_50 : f32 to vector<8x1xf32>
    %162 = arith.addf %161, %160 : vector<8x1xf32>
    %163 = arith.divf %161, %162 : vector<8x1xf32>
    %164 = vector.broadcast %163 : vector<8x1xf32> to vector<8x32xf32>
    %165 = arith.mulf %164, %132 : vector<8x32xf32>
    %166 = arith.addf %131, %165 : vector<8x32xf32>
    %167 = vector.broadcast %154 : vector<8x1xf32> to vector<8x32xf32>
    %168 = arith.mulf %167, %133 : vector<8x32xf32>
    %169 = arith.addf %166, %168 : vector<8x32xf32>
    %c0_51 = arith.constant 0 : index
    %c0_52 = arith.constant 0 : index
    %170 = vector.load %arg5[%c0_51, %c0_52] : memref<32x32xf32, #tpu.memory_space<vmem>>, vector<32x32xf32>
    %171 = arith.addf %0, %169 : vector<8x32xf32>
    %cst_53 = arith.constant dense<0.000000e+00> : vector<8x32xf32>
    %172 = tpu.matmul %171, %170, %cst_53 {dimension_numbers = #tpu.dot_dimension_numbers<[1], [0], [0], [1], [0, 0, 1, 1], [], []>} : vector<8x32xf32>, vector<32x32xf32>, vector<8x32xf32> -> vector<8x32xf32>
    %c0_54 = arith.constant 0 : index
    %c0_55 = arith.constant 0 : index
    %173 = vector.load %arg6[%c0_54, %c0_55] : memref<1x32xf32, #tpu.memory_space<vmem>>, vector<1x32xf32>
    %174 = vector.broadcast %173 : vector<1x32xf32> to vector<8x32xf32>
    %175 = arith.addf %172, %174 : vector<8x32xf32>
    %c0_56 = arith.constant 0 : index
    %c0_57 = arith.constant 0 : index
    %176 = vector.load %arg7[%c0_56, %c0_57] : memref<8x32xf32, #tpu.memory_space<vmem>>, vector<8x32xf32>
    tpu.vector_store %arg7[%c0_56, %c0_57], %175 {strides = array<i32>} : memref<8x32xf32, #tpu.memory_space<vmem>>, vector<8x32xf32>,
    return
  }
  func.func @transform_0(%arg0: i32) -> (i32, i32) {
    %c0_i32 = arith.constant 0 : i32
    %c0_i32_0 = arith.constant 0 : i32
    return %arg0, %c0_i32 : i32, i32
  }
  func.func @transform_1(%arg0: i32) -> (i32, i32) {
    %c0_i32 = arith.constant 0 : i32
    %c0_i32_0 = arith.constant 0 : i32
    return %arg0, %c0_i32 : i32, i32
  }
  func.func @transform_2(%arg0: i32) -> (i32, i32) {
    %c0_i32 = arith.constant 0 : i32
    %c0_i32_0 = arith.constant 0 : i32
    return %arg0, %c0_i32 : i32, i32
  }
  func.func @transform_3(%arg0: i32) -> (i32, i32) {
    %c0_i32 = arith.constant 0 : i32
    %c0_i32_0 = arith.constant 0 : i32
    %c0_i32_1 = arith.constant 0 : i32
    return %c0_i32, %c0_i32_0 : i32, i32
  }
  func.func @transform_4(%arg0: i32) -> (i32, i32) {
    %c0_i32 = arith.constant 0 : i32
    %c0_i32_0 = arith.constant 0 : i32
    %c0_i32_1 = arith.constant 0 : i32
    return %c0_i32, %c0_i32_0 : i32, i32
  }
  func.func @transform_5(%arg0: i32) -> (i32, i32) {
    %c0_i32 = arith.constant 0 : i32
    %c0_i32_0 = arith.constant 0 : i32
    %c0_i32_1 = arith.constant 0 : i32
    return %c0_i32, %c0_i32_0 : i32, i32
  }
  func.func @transform_6(%arg0: i32) -> (i32, i32) {
    %c0_i32 = arith.constant 0 : i32
    %c0_i32_0 = arith.constant 0 : i32
    return %arg0, %c0_i32 : i32, i32
  }
}

</mosaic_0001>

<llo_original>
// kernel: tpu_custom_call.1
$region0: #{tpu_custom_call.1}
  #allocation0 [shape = 'u32[]', space=smem, size = 0x4, offset = 0x4, fixed_abs, tag = 'smem constant byte address 0x4 - core index']
  #allocation1 [shape = 'u32[144,128]{1,0:T(1,128)}', space=vmem, size = 0x12000, scoped, tag = 'internal scratch']
  %s0 = inlined_call_operand.hbm [shape: f32[16,32], index: 0, kind: input, shape index: {}]
  %s1 = inlined_call_operand.hbm [shape: f32[16,128], index: 1, kind: input, shape index: {}]
  %s2 = inlined_call_operand.hbm [shape: f32[16,128], index: 2, kind: input, shape index: {}]
  %s3 = inlined_call_operand.vmem [shape: f32[2,32], index: 3, kind: input, shape index: {}]
  %s4 = inlined_call_operand.hbm [shape: f32[32,32], index: 4, kind: input, shape index: {}]
  %s5 = inlined_call_operand.vmem [shape: f32[1,32], index: 5, kind: input, shape index: {}]
  %s6 = inlined_call_operand.hbm [shape: f32[16,32], index: 6, kind: output, shape index: {}]
  %s7 = sld [smem:[#allocation0]]
  $region73: #{tpu_custom_call.1} parent=0
    _
  %s9 = ssub.s32 1, %s7
  %s10 = scalar_select 0, %s9, %s7
  $region1: #{tpu_custom_call.1} parent=0
    #allocation2 [shape = 'u8[8192]{0}', space=vmem, size = 0x2000, scoped, tag = 'input window, operand 0']
    #allocation3 [shape = 's32[2]{0}', space=sflag, size = 0x8, scoped, tag = 'scoped memory for tpu_custom_call.1']
    #allocation4 [shape = 's32[2]{0}', space=sflag, size = 0x8, scoped, tag = 'scoped memory for tpu_custom_call.1']
    #allocation5 [shape = 'u8[8192]{0}', space=vmem, size = 0x2000, scoped, tag = 'input window, operand 1']
    #allocation6 [shape = 's32[2]{0}', space=sflag, size = 0x8, scoped, tag = 'scoped memory for tpu_custom_call.1']
    #allocation7 [shape = 'u8[8192]{0}', space=vmem, size = 0x2000, scoped, tag = 'input window, operand 2']
    #allocation8 [shape = 'u8[16384]{0}', space=vmem, size = 0x4000, scoped, tag = 'input window, operand 4, single buffered']
    #allocation9 [shape = 's32[1]{0}', space=sflag, size = 0x4, scoped, tag = 'scoped memory for tpu_custom_call.1']
    #allocation10 [shape = 'u8[8192]{0}', space=vmem, size = 0x2000, scoped, tag = 'output window, operand 0']
    %11 = vsyncpa [#allocation3], 0
    %s12 = scalar_lea.sflag [#allocation3], 1
    %13 = vsyncpa %s12, 0
    %14 = vsyncpa [#allocation6], 0
    %s15 = scalar_lea.sflag [#allocation6], 1
    %16 = vsyncpa %s15, 0
    %17 = vsyncpa [#allocation9], 0
    %18 = vsyncpa [#allocation4], 0
    %s19 = scalar_lea.sflag [#allocation4], 1
    %20 = vsyncpa %s19, 0
    loop: start=0, step=1, limit=4
    $region2: #{tpu_custom_call.1} parent=1 // loop_pre_header
      _
    $region3: #{tpu_custom_call.1} parent=1 // loop_header
      %s22 = sphi 0, %s26
      %p23 = scmp.ge.s32.totalorder %s22, 4
      %s32 = sphi 0, %s34
      %s35 = sphi 0, %s32
      %s36 = sphi 0, %s35
      %s52 = sphi 0, %s36
      %s58 = sphi 0, %s60
      %s61 = sphi 0, %s58
      %s62 = sphi 0, %s61
      %s78 = sphi 0, %s62
      %s84 = sphi 0, %s86
      %s87 = sphi 0, %s84
      %s88 = sphi 0, %s87
      %s104 = sphi 0, %s88
      %s108 = sphi 0, %s108
      %s110 = sphi 0, %s108
      %s111 = sphi 0, %s110
      %s125 = sphi 0, %s111
      %s129 = sphi 0, %s129
      %s131 = sphi 0, %s129
      %s132 = sphi 0, %s131
      %s146 = sphi 0, %s132
      %s150 = sphi 0, %s150
      %s152 = sphi 0, %s150
      %s153 = sphi 0, %s152
      %s167 = sphi 0, %s153
      %s173 = sphi 0, %s175
      %s176 = sphi 0, %s173
      %s177 = sphi 0, %s176
      %s193 = sphi 0, %s177
    $region4: #{tpu_custom_call.1} parent=1 // loop_header_branch
      %25 = sbr.rel (%p23) target = $region8
    $region5: #{tpu_custom_call.1} parent=1 // loop_body
      %s27 = ssub.s32 %s22, 1
      %s28 = ssub.s32 %s22, 2
      %s29 = sadd.s32 %s22, 1
      %s30 = ssub.s32 %s22, %s29
      %p31 = scmp.eq.s32.totalorder %s30, 0
      %s33 = sadd.s32 %s32, 1
      %s34 = scalar_select %p31, %s32, %s33
      %p37 = pneg %p31
      %p38 = scmp.eq.s32.totalorder %s22, 1
      %p39 = por %p37, %p38
      %p40 = scmp.ne.s32.totalorder %s32, %s35
      %p41 = scmp.eq.s32.totalorder %s22, 0
      %p42 = por %p40, %p41
      %p43 = scmp.ne.s32.totalorder %s32, %s35
      %p44 = scmp.eq.s32.totalorder %s27, 1
      %p45 = por %p43, %p44
      %p46 = scmp.ne.s32.totalorder %s35, %s36
      %p47 = scmp.eq.s32.totalorder %s27, 0
      %p48 = por %p46, %p47
      %p49 = scmp.ne.s32.totalorder %s35, %s36
      %p50 = scmp.eq.s32.totalorder %s28, 1
      %p51 = por %p49, %p50
      %p53 = scmp.ne.s32.totalorder %s36, %s52
      %p54 = scmp.eq.s32.totalorder %s28, 0
      %p55 = por %p53, %p54
      %s56 = ssub.s32 %s22, %s29
      %p57 = scmp.eq.s32.totalorder %s56, 0
      %s59 = sadd.s32 %s58, 1
      %s60 = scalar_select %p57, %s58, %s59
      %p63 = pneg %p57
      %p64 = scmp.eq.s32.totalorder %s22, 1
      %p65 = por %p63, %p64
      %p66 = scmp.ne.s32.totalorder %s58, %s61
      %p67 = scmp.eq.s32.totalorder %s22, 0
      %p68 = por %p66, %p67
      %p69 = scmp.ne.s32.totalorder %s58, %s61
      %p70 = scmp.eq.s32.totalorder %s27, 1
      %p71 = por %p69, %p70
      %p72 = scmp.ne.s32.totalorder %s61, %s62
      %p73 = scmp.eq.s32.totalorder %s27, 0
      %p74 = por %p72, %p73
      %p75 = scmp.ne.s32.totalorder %s61, %s62
      %p76 = scmp.eq.s32.totalorder %s28, 1
      %p77 = por %p75, %p76
      %p79 = scmp.ne.s32.totalorder %s62, %s78
      %p80 = scmp.eq.s32.totalorder %s28, 0
      %p81 = por %p79, %p80
      %s82 = ssub.s32 %s22, %s29
      %p83 = scmp.eq.s32.totalorder %s82, 0
      %s85 = sadd.s32 %s84, 1
      %s86 = scalar_select %p83, %s84, %s85
      %p89 = pneg %p83
      %p90 = scmp.eq.s32.totalorder %s22, 1
      %p91 = por %p89, %p90
      %p92 = scmp.ne.s32.totalorder %s84, %s87
      %p93 = scmp.eq.s32.totalorder %s22, 0
      %p94 = por %p92, %p93
      %p95 = scmp.ne.s32.totalorder %s84, %s87
      %p96 = scmp.eq.s32.totalorder %s27, 1
      %p97 = por %p95, %p96
      %p98 = scmp.ne.s32.totalorder %s87, %s88
      %p99 = scmp.eq.s32.totalorder %s27, 0
      %p100 = por %p98, %p99
      %p101 = scmp.ne.s32.totalorder %s87, %s88
      %p102 = scmp.eq.s32.totalorder %s28, 1
      %p103 = por %p101, %p102
      %p105 = scmp.ne.s32.totalorder %s88, %s104
      %p106 = scmp.eq.s32.totalorder %s28, 0
      %p107 = por %p105, %p106
      %s109 = sadd.s32 %s108, 1
      %p112 = scmp.eq.s32.totalorder %s22, 1
      %p113 = scmp.ne.s32.totalorder %s108, %s110
      %p114 = scmp.eq.s32.totalorder %s22, 0
      %p115 = por %p113, %p114
      %p116 = scmp.ne.s32.totalorder %s108, %s110
      %p117 = scmp.eq.s32.totalorder %s27, 1
      %p118 = por %p116, %p117
      %p119 = scmp.ne.s32.totalorder %s110, %s111
      %p120 = scmp.eq.s32.totalorder %s27, 0
      %p121 = por %p119, %p120
      %p122 = scmp.ne.s32.totalorder %s110, %s111
      %p123 = scmp.eq.s32.totalorder %s28, 1
      %p124 = por %p122, %p123
      %p126 = scmp.ne.s32.totalorder %s111, %s125
      %p127 = scmp.eq.s32.totalorder %s28, 0
      %p128 = por %p126, %p127
      %s130 = sadd.s32 %s129, 1
      %p133 = scmp.eq.s32.totalorder %s22, 1
      %p134 = scmp.ne.s32.totalorder %s129, %s131
      %p135 = scmp.eq.s32.totalorder %s22, 0
      %p136 = por %p134, %p135
      %p137 = scmp.ne.s32.totalorder %s129, %s131
      %p138 = scmp.eq.s32.totalorder %s27, 1
      %p139 = por %p137, %p138
      %p140 = scmp.ne.s32.totalorder %s131, %s132
      %p141 = scmp.eq.s32.totalorder %s27, 0
      %p142 = por %p140, %p141
      %p143 = scmp.ne.s32.totalorder %s131, %s132
      %p144 = scmp.eq.s32.totalorder %s28, 1
      %p145 = por %p143, %p144
      %p147 = scmp.ne.s32.totalorder %s132, %s146
      %p148 = scmp.eq.s32.totalorder %s28, 0
      %p149 = por %p147, %p148
      %s151 = sadd.s32 %s150, 1
      %p154 = scmp.eq.s32.totalorder %s22, 1
      %p155 = scmp.ne.s32.totalorder %s150, %s152
      %p156 = scmp.eq.s32.totalorder %s22, 0
      %p157 = por %p155, %p156
      %p158 = scmp.ne.s32.totalorder %s150, %s152
      %p159 = scmp.eq.s32.totalorder %s27, 1
      %p160 = por %p158, %p159
      %p161 = scmp.ne.s32.totalorder %s152, %s153
      %p162 = scmp.eq.s32.totalorder %s27, 0
      %p163 = por %p161, %p162
      %p164 = scmp.ne.s32.totalorder %s152, %s153
      %p165 = scmp.eq.s32.totalorder %s28, 1
      %p166 = por %p164, %p165
      %p168 = scmp.ne.s32.totalorder %s153, %s167
      %p169 = scmp.eq.s32.totalorder %s28, 0
      %p170 = por %p168, %p169
      %s171 = ssub.s32 %s22, %s29
      %p172 = scmp.eq.s32.totalorder %s171, 0
      %s174 = sadd.s32 %s173, 1
      %s175 = scalar_select %p172, %s173, %s174
      %p178 = pneg %p172
      %p179 = scmp.eq.s32.totalorder %s22, 1
      %p180 = por %p178, %p179
      %p181 = scmp.ne.s32.totalorder %s173, %s176
      %p182 = scmp.eq.s32.totalorder %s22, 0
      %p183 = por %p181, %p182
      %p184 = scmp.ne.s32.totalorder %s173, %s176
      %p185 = scmp.eq.s32.totalorder %s27, 1
      %p186 = por %p184, %p185
      %p187 = scmp.ne.s32.totalorder %s176, %s177
      %p188 = scmp.eq.s32.totalorder %s27, 0
      %p189 = por %p187, %p188
      %p190 = scmp.ne.s32.totalorder %s176, %s177
      %p191 = scmp.eq.s32.totalorder %s28, 1
      %p192 = por %p190, %p191
      %p194 = scmp.ne.s32.totalorder %s177, %s193
      %p195 = scmp.eq.s32.totalorder %s28, 0
      %p196 = por %p194, %p195
      %p197 = scmp.le.s32.totalorder 1, %s22
      %p198 = scmp.lt.s32.totalorder %s22, 3
      %p199 = pnand %p197, %p198
      %p200 = pneg %p199
      // Predicated region
      $region9: #{tpu_custom_call.1} parent=5 // pred_check
        _
      $region10: #{tpu_custom_call.1} parent=5 // pred_check_branch
        %202 = sbr.rel (%p199) target = $region12
      $region11: #{tpu_custom_call.1} parent=5 // pred_region
        %s203 = ssub.s32 %s22, 1
        // Predicated region
        $region13: #{tpu_custom_call.1} parent=11 // pred_check
          %p204 = pneg %p121
        $region14: #{tpu_custom_call.1} parent=11 // pred_check_branch
          %206 = sbr.rel (%p204) target = $region16
        $region15: #{tpu_custom_call.1} parent=11 // pred_region
          _
        $region16: #{tpu_custom_call.1} parent=11 // pred_fallthru
          _
        // Predicated region
        $region17: #{tpu_custom_call.1} parent=11 // pred_check
          %p207 = pneg %p142
        $region18: #{tpu_custom_call.1} parent=11 // pred_check_branch
          %209 = sbr.rel (%p207) target = $region20
        $region19: #{tpu_custom_call.1} parent=11 // pred_region
          %s211 = ssub.s32 512, 512
          %212 = vsyncadd [#allocation9], %s211
          %s213 = sshll.u32 [#allocation8], 4
          %s214 = int_to_ptr.vmem [resolvable:$true] %s213
          %219 = dma.hbm_to_vmem [thread:$0]  %s4, 512, %s214, [#allocation9], 128, 128, 8
        $region20: #{tpu_custom_call.1} parent=11 // pred_fallthru
          _
        // Predicated region
        $region21: #{tpu_custom_call.1} parent=11 // pred_check
          %p220 = pneg %p163
        $region22: #{tpu_custom_call.1} parent=11 // pred_check_branch
          %222 = sbr.rel (%p220) target = $region24
        $region23: #{tpu_custom_call.1} parent=11 // pred_region
          _
        $region24: #{tpu_custom_call.1} parent=11 // pred_fallthru
          _
      $region12: #{tpu_custom_call.1} parent=5 // pred_fallthru
        _
      %p223 = scmp.lt.s32.totalorder %s22, 2
      // Predicated region
      $region25: #{tpu_custom_call.1} parent=5 // pred_check
        %p224 = pneg %p223
      $region26: #{tpu_custom_call.1} parent=5 // pred_check_branch
        %226 = sbr.rel (%p224) target = $region28
      $region27: #{tpu_custom_call.1} parent=5 // pred_region
        // Predicated region
        $region29: #{tpu_custom_call.1} parent=27 // pred_check
          %p227 = pneg %p42
        $region30: #{tpu_custom_call.1} parent=27 // pred_check_branch
          %229 = sbr.rel (%p227) target = $region32
        $region31: #{tpu_custom_call.1} parent=27 // pred_region
          %s230 = sand.u32 %s32, 1
          %s231 = scalar_lea.sflag [#allocation3], %s230
          %s232 = sand.u32 %s32, 1
          %s233 = smul.addr %s232, 8
          %s234 = scalar_lea.vmem [#allocation2], %s233
          %s236 = ssub.s32 128, 128
          %237 = vsyncadd %s231, %s236
          %s238 = smul.addr %s22, 128
          %s239 = scalar_lea.hbm %s0, %s238
          %s241 = sshll.u32 %s234, 4
          %s242 = int_to_ptr.vmem [resolvable:$true] %s241
          %244 = dma.hbm_to_vmem [thread:$0]  %s239, 128, %s242, %s231
        $region32: #{tpu_custom_call.1} parent=27 // pred_fallthru
          _
        // Predicated region
        $region33: #{tpu_custom_call.1} parent=27 // pred_check
          %p245 = pneg %p68
        $region34: #{tpu_custom_call.1} parent=27 // pred_check_branch
          %247 = sbr.rel (%p245) target = $region36
        $region35: #{tpu_custom_call.1} parent=27 // pred_region
          %s248 = sand.u32 %s22, 1
          %s249 = scalar_lea.sflag [#allocation6], %s248
          %s250 = sand.u32 %s58, 1
          %s251 = smul.addr %s250, 8
          %s252 = scalar_lea.vmem [#allocation5], %s251
          %s254 = ssub.s32 128, 128
          %255 = vsyncadd %s249, %s254
          %s256 = smul.addr %s22, 128
          %s257 = scalar_lea.hbm %s1, %s256
          %s259 = sshll.u32 %s252, 4
          %s260 = int_to_ptr.vmem [resolvable:$true] %s259
          %262 = dma.hbm_to_vmem [thread:$0]  %s257, 128, %s260, %s249
        $region36: #{tpu_custom_call.1} parent=27 // pred_fallthru
          _
        // Predicated region
        $region37: #{tpu_custom_call.1} parent=27 // pred_check
          %p263 = pneg %p94
        $region38: #{tpu_custom_call.1} parent=27 // pred_check_branch
          %265 = sbr.rel (%p263) target = $region40
        $region39: #{tpu_custom_call.1} parent=27 // pred_region
          %s266 = sand.u32 %s22, 1
          %s267 = scalar_lea.sflag [#allocation6], %s266
          %s268 = sand.u32 %s84, 1
          %s269 = smul.addr %s268, 8
          %s270 = scalar_lea.vmem [#allocation7], %s269
          %s272 = ssub.s32 128, 128
          %273 = vsyncadd %s267, %s272
          %s274 = smul.addr %s22, 128
          %s275 = scalar_lea.hbm %s2, %s274
          %s277 = sshll.u32 %s270, 4
          %s278 = int_to_ptr.vmem [resolvable:$true] %s277
          %280 = dma.hbm_to_vmem [thread:$0]  %s275, 128, %s278, %s267
        $region40: #{tpu_custom_call.1} parent=27 // pred_fallthru
          _
      $region28: #{tpu_custom_call.1} parent=5 // pred_fallthru
        _
      %p281 = scmp.le.s32.totalorder 1, %s22
      %p282 = scmp.lt.s32.totalorder %s22, 3
      %p283 = pnand %p281, %p282
      %p284 = pneg %p283
      // Predicated region
      $region41: #{tpu_custom_call.1} parent=5 // pred_check
        _
      $region42: #{tpu_custom_call.1} parent=5 // pred_check_branch
        %286 = sbr.rel (%p283) target = $region44
      $region43: #{tpu_custom_call.1} parent=5 // pred_region
        %s287 = ssub.s32 %s22, 1
        %s288 = sand.u32 %s35, 1
        %s289 = scalar_lea.sflag [#allocation3], %s288
        %s290 = sand.u32 %s35, 1
        %s291 = smul.addr %s290, 8
        %s292 = scalar_lea.vmem [#allocation2], %s291
        // Predicated region
        $region45: #{tpu_custom_call.1} parent=43 // pred_check
          %p293 = pneg %p48
        $region46: #{tpu_custom_call.1} parent=43 // pred_check_branch
          %295 = sbr.rel (%p293) target = $region48
        $region47: #{tpu_custom_call.1} parent=43 // pred_region
          %296 = dma.done %s289, 128
        $region48: #{tpu_custom_call.1} parent=43 // pred_fallthru
          _
        %s297 = sand.u32 %s27, 1
        %s298 = scalar_lea.sflag [#allocation6], %s297
        %s299 = sand.u32 %s61, 1
        %s300 = smul.addr %s299, 8
        %s301 = scalar_lea.vmem [#allocation5], %s300
        // Predicated region
        $region49: #{tpu_custom_call.1} parent=43 // pred_check
          %p302 = pneg %p74
        $region50: #{tpu_custom_call.1} parent=43 // pred_check_branch
          %304 = sbr.rel (%p302) target = $region52
        $region51: #{tpu_custom_call.1} parent=43 // pred_region
          %305 = dma.done %s298, 128
        $region52: #{tpu_custom_call.1} parent=43 // pred_fallthru
          _
        %s306 = sand.u32 %s27, 1
        %s307 = scalar_lea.sflag [#allocation6], %s306
        %s308 = sand.u32 %s87, 1
        %s309 = smul.addr %s308, 8
        %s310 = scalar_lea.vmem [#allocation7], %s309
        // Predicated region
        $region53: #{tpu_custom_call.1} parent=43 // pred_check
          %p311 = pneg %p100
        $region54: #{tpu_custom_call.1} parent=43 // pred_check_branch
          %313 = sbr.rel (%p311) target = $region56
        $region55: #{tpu_custom_call.1} parent=43 // pred_region
          %314 = dma.done %s307, 128
        $region56: #{tpu_custom_call.1} parent=43 // pred_fallthru
          _
        // Predicated region
        $region57: #{tpu_custom_call.1} parent=43 // pred_check
          %p315 = pneg %p142
        $region58: #{tpu_custom_call.1} parent=43 // pred_check_branch
          %317 = sbr.rel (%p315) target = $region60
        $region59: #{tpu_custom_call.1} parent=43 // pred_region
          %318 = dma.done [#allocation9], 512
        $region60: #{tpu_custom_call.1} parent=43 // pred_fallthru
          _
        %s319 = sand.u32 %s35, 1
        %s320 = scalar_lea.sflag [#allocation3], %s319
        %s321 = sand.u32 %s35, 1
        %s322 = smul.addr %s321, 8
        %s323 = scalar_lea.vmem [#allocation2], %s322
        %p324 = pneg %p48
        %p325 = pneg %p45
        %s326 = sand.u32 %s27, 1
        %s327 = scalar_lea.sflag [#allocation6], %s326
        %s328 = sand.u32 %s61, 1
        %s329 = smul.addr %s328, 8
        %s330 = scalar_lea.vmem [#allocation5], %s329
        %p331 = pneg %p74
        %p332 = pneg %p71
        %s333 = sand.u32 %s27, 1
        %s334 = scalar_lea.sflag [#allocation6], %s333
        %s335 = sand.u32 %s87, 1
        %s336 = smul.addr %s335, 8
        %s337 = scalar_lea.vmem [#allocation7], %s336
        %p338 = pneg %p100
        %p339 = pneg %p97
        %p340 = pneg %p121
        %p341 = pneg %p118
        %p342 = pneg %p142
        %p343 = pneg %p139
        %p344 = pneg %p163
        %p345 = pneg %p160
        %p346 = pneg %p189
        %p347 = pneg %p186
        %s348 = sand.u32 %s176, 1
        %s349 = scalar_lea.sflag [#allocation4], %s348
        %s350 = sand.u32 %s176, 1
        %s351 = smul.addr %s350, 8
        %s352 = scalar_lea.vmem [#allocation10], %s351
        %v353 = vld [vmem:[%s292] sm:$0xff]
        %v354 = vld [vmem:[%s3] sm:$0x3]
        %s355 = smul.u32 %s27, 8
        %v356 = vlaneseq
        %v357 = vshrl.u32 %v356, 7
        %v358 = vstv %s355
        %v359 = vadd.s32 %v358, %v357
        %v360 = vlaneseq
        %v361 = vand.u32 %v360, 127
        %v362 = vmul.u32 %v361, 8
        %vm363 = vcmp.ge.s32.totalorder %v359, %v362
        %v364 = vadd.s32 %v362, 8
        %vm365 = vcmp.lt.s32.totalorder %v359, %v364
        %vm366 = vmand %vm363, %vm365
        %v367 = vsel %vm366, 1, 0
        %v368 = vcvt.s32.f32 %v367
        %vm369 = vcmask 15360
        %v371 = vsel %vm369, %v368, 0
        %vm373 = vcmask 1041408
        %v375 = vsel %vm373, %v354, 0
        %377 = vmatprep.subr.mxu0 0.0
        %378 = vmatpush1.msra.mxu0 %v375
        %379 = vmatprep.subr.mxu0 0.0
        %380 = vmatpush1.msra.mxu0 0.0
        %381 = vmatprep.subr.mxu0 0.0
        %382 = vmatpush1.msra.mxu0 0.0
        %383 = vmatprep.subr.mxu0 0.0
        %384 = vmatpush1.msra.mxu0 0.0
        %385 = vmatprep.subr.mxu0 0.0
        %386 = vmatpush1.msra.mxu0 0.0
        %387 = vmatprep.subr.mxu0 0.0
        %388 = vmatpush1.msra.mxu0 0.0
        %389 = vmatprep.subr.mxu0 0.0
        %390 = vmatpush1.msra.mxu0 0.0
        %391 = vmatprep.subr.mxu0 0.0
        %392 = vmatpush1.msra.mxu0 0.0
        %393 = vmatprep.subr.mxu0 0.0
        %394 = vmatpush1.msra.mxu0 0.0
        %395 = vmatprep.subr.mxu0 0.0
        %396 = vmatpush1.msra.mxu0 0.0
        %397 = vmatprep.subr.mxu0 0.0
        %398 = vmatpush1.msra.mxu0 0.0
        %399 = vmatprep.subr.mxu0 0.0
        %400 = vmatpush1.msra.mxu0 0.0
        %401 = vmatprep.subr.mxu0 0.0
        %402 = vmatpush1.msra.mxu0 0.0
        %403 = vmatprep.subr.mxu0 0.0
        %404 = vmatpush1.msra.mxu0 0.0
        %405 = vmatprep.subr.mxu0 0.0
        %406 = vmatpush1.msra.mxu0 0.0
        %407 = vmatprep.subr.mxu0 0.0
        %408 = vmatpush1.msra.mxu0 0.0
        %409 = vmatprep.subr.mxu0 0.0
        %410 = vmatpush1.msra.mxu0 0.0
        %411 = vmatprep.subr.mxu0 0.0
        %412 = vmatpush1.msra.mxu0 0.0
        %413 = vmatprep.subr.mxu0 0.0
        %414 = vmatpush1.msra.mxu0 0.0
        %415 = vmatprep.subr.mxu0 0.0
        %416 = vmatpush1.msra.mxu0 0.0
        %417 = vmatprep.subr.mxu0 0.0
        %418 = vmatpush1.msra.mxu0 0.0
        %419 = vmatprep.subr.mxu0 0.0
        %420 = vmatpush1.msra.mxu0 0.0
        %421 = vmatprep.subr.mxu0 0.0
        %422 = vmatpush1.msra.mxu0 0.0
        %423 = vmatprep.subr.mxu0 0.0
        %424 = vmatpush1.msra.mxu0 0.0
        %425 = vmatprep.subr.mxu0 0.0
        %426 = vmatpush1.msra.mxu0 0.0
        %427 = vmatprep.subr.mxu0 0.0
        %428 = vmatpush1.msra.mxu0 0.0
        %429 = vmatprep.subr.mxu0 0.0
        %430 = vmatpush1.msra.mxu0 0.0
        %431 = vmatprep.subr.mxu0 0.0
        %432 = vmatpush1.msra.mxu0 0.0
        %433 = vmatprep.subr.mxu0 0.0
        %434 = vmatpush1.msra.mxu0 0.0
        %435 = vmatprep.subr.mxu0 0.0
        %436 = vmatpush1.msra.mxu0 0.0
        %437 = vmatprep.subr.mxu0 0.0
        %438 = vmatpush1.msra.mxu0 0.0
        %439 = vmatprep.subr.mxu0 0.0
        %440 = vmatpush1.msra.mxu0 0.0
        %441 = vmatprep.mubr.f32.mxu0 0.0
        %442 = vmatmul.mubr.f32.gmra.mrb[0].mxu0 %v371
        %v443 = vpop.f32.mrb[0].mxu0
        %v444 = vadd.f32 0.0, %v443
        %v445 = vpop.f32.mrb[0].mxu0
        %446 = vdwg.mxu0
        %v447 = vld [vmem:[%s301] sm:$0xff]
        %v448 = vld [vmem:[%s310] sm:$0xff]
        %v449 = vmul.f32 %v447, %v447
        %vm450 = vcmask 261120
        %v451 = vsel %vm450, %v449, 0.0
        %452 = vadd.xlane.f32.xlu0 %v451
        %v453 = vpop.xlane.xlu0 %452
        %v454 = vmax.f32 %v453, 1e-24
        %v455 = vrsqrt.pop %v454
        %v456 = vmul.f32 %v448, %v448
        %v457 = vsel %vm450, %v456, 0.0
        %458 = vadd.xlane.f32.xlu0 %v457
        %v459 = vpop.xlane.xlu0 %458
        %v460 = vmax.f32 %v459, 1e-24
        %v461 = vrsqrt.pop %v460
        %v462 = vmul.f32 %v444, %v447
        %v463 = vsel %vm450, %v462, 0.0
        %464 = vadd.xlane.f32.xlu0 %v463
        %v465 = vpop.xlane.xlu0 %464
        %v466 = vmul.f32 %v465, %v455
        %v467 = vxor.u32 %v466, 2147483648
        %v468 = vmul.f32 %v467, 1.442695
        %v469 = vpow.pop %v468
        %v470 = vadd.f32 %v469, 1.0
        %v471 = vrcp.pop %v470
        %v472 = vmul.f32 1.0, %v471
        %v473 = vmul.f32 %v444, %v448
        %v474 = vsel %vm450, %v473, 0.0
        %475 = vadd.xlane.f32.xlu0 %v474
        %v476 = vpop.xlane.xlu0 %475
        %v477 = vmul.f32 %v476, %v461
        %v478 = vxor.u32 %v477, 2147483648
        %v479 = vmul.f32 %v478, 1.442695
        %v480 = vpow.pop %v479
        %v481 = vadd.f32 %v480, 1.0
        %v482 = vrcp.pop %v481
        %v483 = vmul.f32 1.0, %v482
        %v484 = vmul.f32 %v483, %v447
        %v485 = vadd.f32 %v484, 0.0
        %v486 = vmul.f32 %v472, %v448
        %v487 = vadd.f32 %v485, %v486
        %489 = vrot.lane.b32.xlu0 %v449, 96
        %v490 = vpop.permute.xlu0 %489
        %v492 = vsel %vm450, %v490, 0.0
        %493 = vadd.xlane.f32.xlu0 %v492
        %v494 = vpop.xlane.xlu0 %493
        %v495 = vmax.f32 %v494, 1e-24
        %v496 = vrsqrt.pop %v495
        %498 = vrot.lane.b32.xlu0 %v456, 96
        %v499 = vpop.permute.xlu0 %498
        %v501 = vsel %vm450, %v499, 0.0
        %502 = vadd.xlane.f32.xlu0 %v501
        %v503 = vpop.xlane.xlu0 %502
        %v504 = vmax.f32 %v503, 1e-24
        %v505 = vrsqrt.pop %v504
        %507 = vrot.lane.b32.xlu0 %v447, 96
        %v508 = vpop.permute.xlu0 %507
        %v510 = vmul.f32 %v444, %v508
        %v511 = vsel %vm450, %v510, 0.0
        %512 = vadd.xlane.f32.xlu0 %v511
        %v513 = vpop.xlane.xlu0 %512
        %v514 = vmul.f32 %v513, %v496
        %v515 = vxor.u32 %v514, 2147483648
        %v516 = vmul.f32 %v515, 1.442695
        %v517 = vpow.pop %v516
        %v518 = vadd.f32 %v517, 1.0
        %v519 = vrcp.pop %v518
        %v520 = vmul.f32 1.0, %v519
        %522 = vrot.lane.b32.xlu0 %v448, 96
        %v523 = vpop.permute.xlu0 %522
        %v525 = vmul.f32 %v444, %v523
        %v526 = vsel %vm450, %v525, 0.0
        %527 = vadd.xlane.f32.xlu0 %v526
        %v528 = vpop.xlane.xlu0 %527
        %v529 = vmul.f32 %v528, %v505
        %v530 = vxor.u32 %v529, 2147483648
        %v531 = vmul.f32 %v530, 1.442695
        %v532 = vpow.pop %v531
        %v533 = vadd.f32 %v532, 1.0
        %v534 = vrcp.pop %v533
        %v535 = vmul.f32 1.0, %v534
        %v536 = vmul.f32 %v535, %v447
        %538 = vrot.lane.b32.xlu0 %v536, 96
        %v539 = vpop.permute.xlu0 %538
        %v541 = vadd.f32 %v487, %v539
        %v542 = vmul.f32 %v520, %v448
        %544 = vrot.lane.b32.xlu0 %v542, 96
        %v545 = vpop.permute.xlu0 %544
        %v547 = vadd.f32 %v541, %v545
        %548 = vrot.lane.b32.xlu0 %v449, 64
        %v549 = vpop.permute.xlu0 %548
        %v551 = vsel %vm450, %v549, 0.0
        %552 = vadd.xlane.f32.xlu0 %v551
        %v553 = vpop.xlane.xlu0 %552
        %v554 = vmax.f32 %v553, 1e-24
        %v555 = vrsqrt.pop %v554
        %556 = vrot.lane.b32.xlu0 %v456, 64
        %v557 = vpop.permute.xlu0 %556
        %v559 = vsel %vm450, %v557, 0.0
        %560 = vadd.xlane.f32.xlu0 %v559
        %v561 = vpop.xlane.xlu0 %560
        %v562 = vmax.f32 %v561, 1e-24
        %v563 = vrsqrt.pop %v562
        %564 = vrot.lane.b32.xlu0 %v447, 64
        %v565 = vpop.permute.xlu0 %564
        %v567 = vmul.f32 %v444, %v565
        %v568 = vsel %vm450, %v567, 0.0
        %569 = vadd.xlane.f32.xlu0 %v568
        %v570 = vpop.xlane.xlu0 %569
        %v571 = vmul.f32 %v570, %v555
        %v572 = vxor.u32 %v571, 2147483648
        %v573 = vmul.f32 %v572, 1.442695
        %v574 = vpow.pop %v573
        %v575 = vadd.f32 %v574, 1.0
        %v576 = vrcp.pop %v575
        %v577 = vmul.f32 1.0, %v576
        %578 = vrot.lane.b32.xlu0 %v448, 64
        %v579 = vpop.permute.xlu0 %578
        %v581 = vmul.f32 %v444, %v579
        %v582 = vsel %vm450, %v581, 0.0
        %583 = vadd.xlane.f32.xlu0 %v582
        %v584 = vpop.xlane.xlu0 %583
        %v585 = vmul.f32 %v584, %v563
        %v586 = vxor.u32 %v585, 2147483648
        %v587 = vmul.f32 %v586, 1.442695
        %v588 = vpow.pop %v587
        %v589 = vadd.f32 %v588, 1.0
        %v590 = vrcp.pop %v589
        %v591 = vmul.f32 1.0, %v590
        %v592 = vmul.f32 %v591, %v447
        %594 = vrot.lane.b32.xlu0 %v592, 64
        %v595 = vpop.permute.xlu0 %594
        %v597 = vadd.f32 %v547, %v595
        %v598 = vmul.f32 %v577, %v448
        %600 = vrot.lane.b32.xlu0 %v598, 64
        %v601 = vpop.permute.xlu0 %600
        %v603 = vadd.f32 %v597, %v601
        %604 = vrot.lane.b32.xlu0 %v449, 32
        %v605 = vpop.permute.xlu0 %604
        %v607 = vsel %vm450, %v605, 0.0
        %608 = vadd.xlane.f32.xlu0 %v607
        %v609 = vpop.xlane.xlu0 %608
        %v610 = vmax.f32 %v609, 1e-24
        %v611 = vrsqrt.pop %v610
        %612 = vrot.lane.b32.xlu0 %v456, 32
        %v613 = vpop.permute.xlu0 %612
        %v615 = vsel %vm450, %v613, 0.0
        %616 = vadd.xlane.f32.xlu0 %v615
        %v617 = vpop.xlane.xlu0 %616
        %v618 = vmax.f32 %v617, 1e-24
        %v619 = vrsqrt.pop %v618
        %620 = vrot.lane.b32.xlu0 %v447, 32
        %v621 = vpop.permute.xlu0 %620
        %v623 = vmul.f32 %v444, %v621
        %v624 = vsel %vm450, %v623, 0.0
        %625 = vadd.xlane.f32.xlu0 %v624
        %v626 = vpop.xlane.xlu0 %625
        %v627 = vmul.f32 %v626, %v611
        %v628 = vxor.u32 %v627, 2147483648
        %v629 = vmul.f32 %v628, 1.442695
        %v630 = vpow.pop %v629
        %v631 = vadd.f32 %v630, 1.0
        %v632 = vrcp.pop %v631
        %v633 = vmul.f32 1.0, %v632
        %634 = vrot.lane.b32.xlu0 %v448, 32
        %v635 = vpop.permute.xlu0 %634
        %v637 = vmul.f32 %v444, %v635
        %v638 = vsel %vm450, %v637, 0.0
        %639 = vadd.xlane.f32.xlu0 %v638
        %v640 = vpop.xlane.xlu0 %639
        %v641 = vmul.f32 %v640, %v619
        %v642 = vxor.u32 %v641, 2147483648
        %v643 = vmul.f32 %v642, 1.442695
        %v644 = vpow.pop %v643
        %v645 = vadd.f32 %v644, 1.0
        %v646 = vrcp.pop %v645
        %v647 = vmul.f32 1.0, %v646
        %v648 = vmul.f32 %v647, %v447
        %650 = vrot.lane.b32.xlu0 %v648, 32
        %v651 = vpop.permute.xlu0 %650
        %v653 = vadd.f32 %v603, %v651
        %v654 = vmul.f32 %v633, %v448
        %656 = vrot.lane.b32.xlu0 %v654, 32
        %v657 = vpop.permute.xlu0 %656
        %v659 = vadd.f32 %v653, %v657
        %v660 = vld [vmem:[#allocation8] sm:$0xff]
        %v661 = vld [vmem:[#allocation8 + $0x8] sm:$0xff]
        %v662 = vld [vmem:[#allocation8 + $0x10] sm:$0xff]
        %v663 = vld [vmem:[#allocation8 + $0x18] sm:$0xff]
        %v664 = vadd.f32 %v353, %v659
        %v665 = vld [vmem:[%s5] sm:$0x1]
        %v667 = vlaneseq
        %v668 = vshrl.u32 %v667, 7
        %v669 = vsub.s32 0, %v668
        %v670 = vrot.slane %v665, %v669
        %v673 = vsel %vm450, %v664, 0
        %675 = vmatprep.subr.mxu0 0.0
        %676 = vmatpush1.msra.mxu0 %v660
        %677 = vmatprep.subr.mxu0 0.0
        %678 = vmatpush1.msra.mxu0 %v661
        %679 = vmatprep.subr.mxu0 0.0
        %680 = vmatpush1.msra.mxu0 %v662
        %681 = vmatprep.subr.mxu0 0.0
        %682 = vmatpush1.msra.mxu0 %v663
        %683 = vmatprep.subr.mxu0 0.0
        %684 = vmatpush1.msra.mxu0 0.0
        %685 = vmatprep.subr.mxu0 0.0
        %686 = vmatpush1.msra.mxu0 0.0
        %687 = vmatprep.subr.mxu0 0.0
        %688 = vmatpush1.msra.mxu0 0.0
        %689 = vmatprep.subr.mxu0 0.0
        %690 = vmatpush1.msra.mxu0 0.0
        %691 = vmatprep.subr.mxu0 0.0
        %692 = vmatpush1.msra.mxu0 0.0
        %693 = vmatprep.subr.mxu0 0.0
        %694 = vmatpush1.msra.mxu0 0.0
        %695 = vmatprep.subr.mxu0 0.0
        %696 = vmatpush1.msra.mxu0 0.0
        %697 = vmatprep.subr.mxu0 0.0
        %698 = vmatpush1.msra.mxu0 0.0
        %699 = vmatprep.subr.mxu0 0.0
        %700 = vmatpush1.msra.mxu0 0.0
        %701 = vmatprep.subr.mxu0 0.0
        %702 = vmatpush1.msra.mxu0 0.0
        %703 = vmatprep.subr.mxu0 0.0
        %704 = vmatpush1.msra.mxu0 0.0
        %705 = vmatprep.subr.mxu0 0.0
        %706 = vmatpush1.msra.mxu0 0.0
        %707 = vmatprep.subr.mxu0 0.0
        %708 = vmatpush1.msra.mxu0 0.0
        %709 = vmatprep.subr.mxu0 0.0
        %710 = vmatpush1.msra.mxu0 0.0
        %711 = vmatprep.subr.mxu0 0.0
        %712 = vmatpush1.msra.mxu0 0.0
        %713 = vmatprep.subr.mxu0 0.0
        %714 = vmatpush1.msra.mxu0 0.0
        %715 = vmatprep.subr.mxu0 0.0
        %716 = vmatpush1.msra.mxu0 0.0
        %717 = vmatprep.subr.mxu0 0.0
        %718 = vmatpush1.msra.mxu0 0.0
        %719 = vmatprep.subr.mxu0 0.0
        %720 = vmatpush1.msra.mxu0 0.0
        %721 = vmatprep.subr.mxu0 0.0
        %722 = vmatpush1.msra.mxu0 0.0
        %723 = vmatprep.subr.mxu0 0.0
        %724 = vmatpush1.msra.mxu0 0.0
        %725 = vmatprep.subr.mxu0 0.0
        %726 = vmatpush1.msra.mxu0 0.0
        %727 = vmatprep.subr.mxu0 0.0
        %728 = vmatpush1.msra.mxu0 0.0
        %729 = vmatprep.subr.mxu0 0.0
        %730 = vmatpush1.msra.mxu0 0.0
        %731 = vmatprep.subr.mxu0 0.0
        %732 = vmatpush1.msra.mxu0 0.0
        %733 = vmatprep.subr.mxu0 0.0
        %734 = vmatpush1.msra.mxu0 0.0
        %735 = vmatprep.subr.mxu0 0.0
        %736 = vmatpush1.msra.mxu0 0.0
        %737 = vmatprep.subr.mxu0 0.0
        %738 = vmatpush1.msra.mxu0 0.0
        %739 = vmatprep.mubr.f32.mxu0 0.0
        %740 = vmatmul.mubr.f32.gmra.mrb[0].mxu0 %v673
        %v741 = vpop.f32.mrb[0].mxu0
        %v742 = vadd.f32 %v670, %v741
        %v743 = vpop.f32.mrb[0].mxu0
        %744 = vdwg.mxu0
        %745 = vst.msk [vmem:[%s352] sm:$0xff] %vm450, %v742
        %s746 = sand.u32 %s176, 1
        %s747 = scalar_lea.sflag [#allocation4], %s746
        %s748 = sand.u32 %s176, 1
        %s749 = smul.addr %s748, 8
        %s750 = scalar_lea.vmem [#allocation10], %s749
        // Predicated region
        $region61: #{tpu_custom_call.1} parent=43 // pred_check
          %p751 = pneg %p186
        $region62: #{tpu_custom_call.1} parent=43 // pred_check_branch
          %753 = sbr.rel (%p751) target = $region64
        $region63: #{tpu_custom_call.1} parent=43 // pred_region
          %s755 = ssub.s32 128, 128
          %756 = vsyncadd %s747, %s755
          %s757 = smul.addr %s27, 128
          %s758 = scalar_lea.hbm %s6, %s757
          %s760 = sshll.u32 %s750, 4
          %s761 = int_to_ptr.vmem [resolvable:$true] %s760
          %763 = dma.vmem_to_hbm [thread:$0]  %s761, 128, %s758, %s747
        $region64: #{tpu_custom_call.1} parent=43 // pred_fallthru
          _
      $region44: #{tpu_custom_call.1} parent=5 // pred_fallthru
        _
      %p764 = scmp.le.s32.totalorder 2, %s22
      // Predicated region
      $region65: #{tpu_custom_call.1} parent=5 // pred_check
        %p765 = pneg %p764
      $region66: #{tpu_custom_call.1} parent=5 // pred_check_branch
        %767 = sbr.rel (%p765) target = $region68
      $region67: #{tpu_custom_call.1} parent=5 // pred_region
        %s768 = ssub.s32 %s22, 2
        // Predicated region
        $region69: #{tpu_custom_call.1} parent=67 // pred_check
          %p769 = pneg %p192
        $region70: #{tpu_custom_call.1} parent=67 // pred_check_branch
          %771 = sbr.rel (%p769) target = $region72
        $region71: #{tpu_custom_call.1} parent=67 // pred_region
          %s772 = sand.u32 %s177, 1
          %s773 = scalar_lea.sflag [#allocation4], %s772
          %s774 = sand.u32 %s177, 1
          %s775 = smul.addr %s774, 8
          %s776 = scalar_lea.vmem [#allocation10], %s775
          %777 = dma.done %s773, 128
        $region72: #{tpu_custom_call.1} parent=67 // pred_fallthru
          _
      $region68: #{tpu_custom_call.1} parent=5 // pred_fallthru
        _
    $region6: #{tpu_custom_call.1} parent=1 // loop_footer
      %s26 = sadd.s32 1, %s22
    $region7: #{tpu_custom_call.1} parent=1 // loop_footer_branch
      %21 = sbr.rel target = $region3
    $region8: #{tpu_custom_call.1} parent=1 // loop_exit
      _
    %778 = vsyncpa [#allocation3], 1
    %s779 = scalar_lea.sflag [#allocation3], 1
    %780 = vsyncpa %s779, 1
    %781 = vsyncpa [#allocation6], 1
    %s782 = scalar_lea.sflag [#allocation6], 1
    %783 = vsyncpa %s782, 1
    %784 = vsyncpa [#allocation9], 1
    %785 = vsyncpa [#allocation4], 1
    %s786 = scalar_lea.sflag [#allocation4], 1
    %787 = vsyncpa %s786, 1

</llo_original>
